<compile_context>
chip_gen: v5e
topology: v5e:2x2
jax: 0.10.0
libtpu: 0.0.40
codegen_flags: <defaults>
</compile_context>

<pallas_src>
import functools

import jax
import jax.numpy as jnp
from jax.experimental import pallas as pl
from jax.experimental.pallas import tpu as pltpu

IMAGE_SIZE = 64
HIDDEN = [128, 64, 10, 10, 10, 10]      # fc0..fc5 output dims
NUM_CLASSES = HIDDEN[-1]
NUM_LAYERS = len(HIDDEN)
PAD_WIDTH = 128                          # every hidden layer computed at lane width 128
MAX_TILE_B = 2048                        # huge VMEM headroom even on v7x (64 MiB)
SMALL_BATCH = 128                        # below this, a single tile (splitting buys nothing)


def _round_up(n, m):
    return ((n + m - 1) // m) * m


def _cdiv(a, b):
    return -(-a // b)


def _use_bf16_activations():
    """bf16 sigmoid/activations only on chips with a bf16 VPU/EUP (v6e, v7x)."""
    try:
        kind = jax.devices()[0].device_kind.lower()
    except Exception:
        return True
    for old in ("v2", "v3", "v4", "v5"):
        if old in kind:
            return False
    return True


def modelf_kernel(x_ref, w_ref, b_ref, o_ref, *, act_dtype):
    # Biases loaded once per tile; (8,128) f32, VMEM-resident across the grid.
    biases = b_ref[...]

    def layer(h_bf16, i, fan_in):
        # Weight slice only along the row (K) axis; lanes stay 128-dense.
        w = w_ref[i, :fan_in, :]
        acc = jnp.dot(h_bf16, w, preferred_element_type=jnp.float32)
        return acc + biases[i:i + 1, :]

    def sigmoid_to_bf16(a):
        a = a.astype(act_dtype)
        # One EUP tanh instead of exp + full-precision divide.
        s = 0.5 * (jnp.tanh(0.5 * a) + 1.0)
        return s.astype(jnp.bfloat16)

    # Input tile straight to bf16 (no f32 round trip).
    h = x_ref[...].astype(jnp.bfloat16)                        # (TILE_B, 64)
    h = sigmoid_to_bf16(layer(h, 0, IMAGE_SIZE))               # (TILE_B, 128)
    for i in range(1, NUM_LAYERS - 1):
        h = sigmoid_to_bf16(layer(h, i, PAD_WIDTH))
    logits = layer(h, NUM_LAYERS - 1, PAD_WIDTH)               # (TILE_B, 128) f32

    # Mask padded lanes, then numerically-stable log_softmax over the 10 classes.
    lane = jax.lax.broadcasted_iota(jnp.int32, logits.shape, 1)
    logits = jnp.where(lane < NUM_CLASSES, logits, -1e30)
    m = jnp.max(logits, axis=1, keepdims=True)
    shifted = logits - m
    lse = jnp.log(jnp.sum(jnp.exp(shifted), axis=1, keepdims=True))
    o_ref[...] = (shifted - lse)[:, :NUM_CLASSES].astype(o_ref.dtype)


def init_params(key, image_size=IMAGE_SIZE):
    """Deterministic init mimicking PyTorch nn.Linear default (U[-1/sqrt(fan_in), +])."""
    dims = [image_size] + HIDDEN
    params = []
    for i in range(NUM_LAYERS):
        fan_in, fan_out = dims[i], dims[i + 1]
        key, kw, kb = jax.random.split(key, 3)
        bound = 1.0 / jnp.sqrt(jnp.float32(fan_in))
        w = jax.random.uniform(kw, (fan_in, fan_out), jnp.float32, -bound, bound)
        b = jax.random.uniform(kb, (1, fan_out), jnp.float32, -bound, bound)
        params += [w, b]
    return params


def prepare_params(params):
    """One-time packing (call OUTSIDE the jitted forward): weights zero-padded to
    (128,128) tiles stacked into bf16 wpack; biases packed into one (8,128) f32."""
    wpack = jnp.zeros((NUM_LAYERS, PAD_WIDTH, PAD_WIDTH), jnp.float32)
    bpack = jnp.zeros((8, PAD_WIDTH), jnp.float32)
    for i in range(NUM_LAYERS):
        w, b = params[2 * i], params[2 * i + 1]
        fan_in, fan_out = w.shape
        wpack = wpack.at[i, :fan_in, :fan_out].set(w)
        bpack = bpack.at[i, :fan_out].set(b.reshape(-1))
    return wpack.astype(jnp.bfloat16), bpack


def _choose_tile(batch):
    if batch <= SMALL_BATCH:
        return _round_up(batch, 8)
    num_tiles = max(2, _cdiv(batch, MAX_TILE_B))
    if num_tiles % 2:
        num_tiles += 1                       # even tile count -> balanced on v7x's 2 TCs
    return min(MAX_TILE_B, _round_up(_cdiv(batch, num_tiles), 8))


@jax.jit
def modelf_forward(x, wpack, bpack):
    # glue: flatten like x.view(-1, image_size); keep native dtype (cast in-kernel).
    x2d = x.reshape(-1, IMAGE_SIZE)
    batch = x2d.shape[0]

    tile_b = _choose_tile(batch)
    batch_pad = _round_up(batch, tile_b)
    if batch_pad != batch:
        x2d = jnp.pad(x2d, ((0, batch_pad - batch), (0, 0)))
    grid = (batch_pad // tile_b,)

    act_dtype = jnp.bfloat16 if _use_bf16_activations() else jnp.float32
    kernel = functools.partial(modelf_kernel, act_dtype=act_dtype)

    # Advisory cost estimate for XLA's scheduler (padded-width compute).
    flops = 2 * batch_pad * (IMAGE_SIZE * PAD_WIDTH
                             + (NUM_LAYERS - 1) * PAD_WIDTH * PAD_WIDTH)
    transcendentals = batch_pad * ((NUM_LAYERS - 1) * PAD_WIDTH + PAD_WIDTH + 1)
    bytes_accessed = (batch_pad * IMAGE_SIZE * x2d.dtype.itemsize
                      + batch_pad * NUM_CLASSES * 4
                      + int(wpack.size) * 2 + int(bpack.size) * 4)

    out = pl.pallas_call(
        kernel,
        out_shape=jax.ShapeDtypeStruct((batch_pad, NUM_CLASSES), jnp.float32),
        grid=grid,
        in_specs=[
            pl.BlockSpec((tile_b, IMAGE_SIZE), lambda i: (i, 0)),
            pl.BlockSpec(wpack.shape, lambda i: (0, 0, 0)),    # constant map -> VMEM-resident
            pl.BlockSpec(bpack.shape, lambda i: (0, 0)),       # constant map -> VMEM-resident
        ],
        out_specs=pl.BlockSpec((tile_b, NUM_CLASSES), lambda i: (i, 0)),
        compiler_params=pltpu.CompilerParams(
            dimension_semantics=("parallel",),
            vmem_limit_bytes=32 * 1024 * 1024),
        cost_estimate=pl.CostEstimate(
            flops=flops,
            transcendentals=transcendentals,
            bytes_accessed=bytes_accessed),
    )(x2d, wpack, bpack)

    return out[:batch]


def reference_forward(x, *params):
    """Pure-JAX f32 reference for verification."""
    h = x.reshape(-1, IMAGE_SIZE).astype(jnp.float32)
    for i in range(NUM_LAYERS - 1):
        w, b = params[2 * i], params[2 * i + 1]
        h = jax.nn.sigmoid(h @ w + b)
    w, b = params[-2], params[-1]
    return jax.nn.log_softmax(h @ w + b, axis=1)


if __name__ == "__main__":
    key = jax.random.PRNGKey(0)
    kp, kx, kx2 = jax.random.split(key, 3)
    params = init_params(kp)
    wpack, bpack = prepare_params(params)   # one-time prep, outside the jitted forward

    # small image-like input: (batch=2, channels=1, 8, 8) -> flattened to (2, 64)
    x = jax.random.normal(kx, (2, 1, 8, 8), jnp.float32)
    out = modelf_forward(x, wpack, bpack)
    jax.block_until_ready(out)

    ref = reference_forward(x, *params)
    assert out.shape == (2, 10), f"bad shape {out.shape}"
    # bf16 MXU operands / bf16 activations -> tolerance relaxed vs the f32 reference.
    assert jnp.allclose(out, ref, atol=5e-2, rtol=1e-2), "mismatch vs reference (tiny batch)"
    assert jnp.allclose(jnp.sum(jnp.exp(out), axis=1), 1.0, atol=1e-3)

    # exercise the multi-tile / padded-batch path as well (still small).
    x_big = jax.random.normal(kx2, (300, IMAGE_SIZE), jnp.float32)
    out_big = modelf_forward(x_big, wpack, bpack)
    jax.block_until_ready(out_big)
    ref_big = reference_forward(x_big, *params)
    assert out_big.shape == (300, 10), f"bad shape {out_big.shape}"
    assert jnp.allclose(out_big, ref_big, atol=5e-2, rtol=1e-2), "mismatch vs reference (multi-tile)"
    assert jnp.allclose(jnp.sum(jnp.exp(out_big), axis=1), 1.0, atol=1e-3)

    print("KERNEL_OK")
</pallas_src>

<mosaic_0001>
module attributes {stable_mosaic.version = 11 : i64} {
  func.func @modelf_kernel(%arg0: i32, %arg1: memref<8x64xf32, #tpu.memory_space<vmem>>, %arg2: memref<6x128x128xbf16, #tpu.memory_space<vmem>>, %arg3: memref<8x128xf32, #tpu.memory_space<vmem>>, %arg4: memref<8x10xf32, #tpu.memory_space<vmem>>) attributes {dimension_semantics = [#tpu.dimension_semantics<parallel>], iteration_bounds = array<i64: 1>, scalar_prefetch = 0 : i64, scratch_operands = 0 : i64, tpu.core_type = #tpu.core_type<tc>, window_params = [{transform_indices = @transform_0, window_bounds = array<i64: 8, 64>}, {pipeline_mode = #tpu.pipeline_mode<synchronous>, transform_indices = @transform_1, window_bounds = array<i64: 6, 128, 128>}, {pipeline_mode = #tpu.pipeline_mode<synchronous>, transform_indices = @transform_2, window_bounds = array<i64: 8, 128>}, {transform_indices = @transform_3, window_bounds = array<i64: 8, 10>}]} {
    %c0 = arith.constant 0 : index
    %c0_0 = arith.constant 0 : index
    %0 = vector.load %arg3[%c0, %c0_0] : memref<8x128xf32, #tpu.memory_space<vmem>>, vector<8x128xf32>
    %c0_1 = arith.constant 0 : index
    %c0_2 = arith.constant 0 : index
    %1 = vector.load %arg1[%c0_1, %c0_2] : memref<8x64xf32, #tpu.memory_space<vmem>>, vector<8x64xf32>
    %2 = arith.truncf %1 : vector<8x64xf32> to vector<8x64xbf16>
    %c0_3 = arith.constant 0 : index
    %c0_4 = arith.constant 0 : index
    %c0_5 = arith.constant 0 : index
    %3 = vector.load %arg2[%c0_3, %c0_4, %c0_5] : memref<6x128x128xbf16, #tpu.memory_space<vmem>>, vector<1x64x128xbf16>
    %4 = vector.shape_cast %3 : vector<1x64x128xbf16> to vector<64x128xbf16>
    %cst = arith.constant dense<0.000000e+00> : vector<8x128xf32>
    %5 = tpu.matmul %2, %4, %cst {dimension_numbers = #tpu.dot_dimension_numbers<[1], [0], [0], [1], [0, 0, 1, 1], [], []>} : vector<8x64xbf16>, vector<64x128xbf16>, vector<8x128xf32> -> vector<8x128xf32>
    %6 = vector.extract_strided_slice %0 {offsets = [0, 0], sizes = [1, 128], strides = [1, 1]} : vector<8x128xf32> to vector<1x128xf32>
    %7 = vector.broadcast %6 : vector<1x128xf32> to vector<8x128xf32>
    %8 = arith.addf %5, %7 : vector<8x128xf32>
    %9 = arith.truncf %8 : vector<8x128xf32> to vector<8x128xbf16>
    %cst_6 = arith.constant 5.000000e-01 : bf16
    %10 = vector.broadcast %cst_6 : bf16 to vector<8x128xbf16>
    %11 = arith.mulf %10, %9 : vector<8x128xbf16>
    %12 = math.tanh %11 : vector<8x128xbf16>
    %cst_7 = arith.constant 1.000000e+00 : bf16
    %13 = vector.broadcast %cst_7 : bf16 to vector<8x128xbf16>
    %14 = arith.addf %12, %13 : vector<8x128xbf16>
    %cst_8 = arith.constant 5.000000e-01 : bf16
    %15 = vector.broadcast %cst_8 : bf16 to vector<8x128xbf16>
    %16 = arith.mulf %15, %14 : vector<8x128xbf16>
    %c1 = arith.constant 1 : index
    %c0_9 = arith.constant 0 : index
    %c0_10 = arith.constant 0 : index
    %17 = vector.load %arg2[%c1, %c0_9, %c0_10] : memref<6x128x128xbf16, #tpu.memory_space<vmem>>, vector<1x128x128xbf16>
    %18 = vector.shape_cast %17 : vector<1x128x128xbf16> to vector<128x128xbf16>
    %cst_11 = arith.constant dense<0.000000e+00> : vector<8x128xf32>
    %19 = tpu.matmul %16, %18, %cst_11 {dimension_numbers = #tpu.dot_dimension_numbers<[1], [0], [0], [1], [0, 0, 1, 1], [], []>} : vector<8x128xbf16>, vector<128x128xbf16>, vector<8x128xf32> -> vector<8x128xf32>
    %20 = vector.extract_strided_slice %0 {offsets = [1, 0], sizes = [1, 128], strides = [1, 1]} : vector<8x128xf32> to vector<1x128xf32>
    %21 = vector.broadcast %20 : vector<1x128xf32> to vector<8x128xf32>
    %22 = arith.addf %19, %21 : vector<8x128xf32>
    %23 = arith.truncf %22 : vector<8x128xf32> to vector<8x128xbf16>
    %cst_12 = arith.constant 5.000000e-01 : bf16
    %24 = vector.broadcast %cst_12 : bf16 to vector<8x128xbf16>
    %25 = arith.mulf %24, %23 : vector<8x128xbf16>
    %26 = math.tanh %25 : vector<8x128xbf16>
    %cst_13 = arith.constant 1.000000e+00 : bf16
    %27 = vector.broadcast %cst_13 : bf16 to vector<8x128xbf16>
    %28 = arith.addf %26, %27 : vector<8x128xbf16>
    %cst_14 = arith.constant 5.000000e-01 : bf16
    %29 = vector.broadcast %cst_14 : bf16 to vector<8x128xbf16>
    %30 = arith.mulf %29, %28 : vector<8x128xbf16>
    %c2 = arith.constant 2 : index
    %c0_15 = arith.constant 0 : index
    %c0_16 = arith.constant 0 : index
    %31 = vector.load %arg2[%c2, %c0_15, %c0_16] : memref<6x128x128xbf16, #tpu.memory_space<vmem>>, vector<1x128x128xbf16>
    %32 = vector.shape_cast %31 : vector<1x128x128xbf16> to vector<128x128xbf16>
    %cst_17 = arith.constant dense<0.000000e+00> : vector<8x128xf32>
    %33 = tpu.matmul %30, %32, %cst_17 {dimension_numbers = #tpu.dot_dimension_numbers<[1], [0], [0], [1], [0, 0, 1, 1], [], []>} : vector<8x128xbf16>, vector<128x128xbf16>, vector<8x128xf32> -> vector<8x128xf32>
    %34 = vector.extract_strided_slice %0 {offsets = [2, 0], sizes = [1, 128], strides = [1, 1]} : vector<8x128xf32> to vector<1x128xf32>
    %35 = vector.broadcast %34 : vector<1x128xf32> to vector<8x128xf32>
    %36 = arith.addf %33, %35 : vector<8x128xf32>
    %37 = arith.truncf %36 : vector<8x128xf32> to vector<8x128xbf16>
    %cst_18 = arith.constant 5.000000e-01 : bf16
    %38 = vector.broadcast %cst_18 : bf16 to vector<8x128xbf16>
    %39 = arith.mulf %38, %37 : vector<8x128xbf16>
    %40 = math.tanh %39 : vector<8x128xbf16>
    %cst_19 = arith.constant 1.000000e+00 : bf16
    %41 = vector.broadcast %cst_19 : bf16 to vector<8x128xbf16>
    %42 = arith.addf %40, %41 : vector<8x128xbf16>
    %cst_20 = arith.constant 5.000000e-01 : bf16
    %43 = vector.broadcast %cst_20 : bf16 to vector<8x128xbf16>
    %44 = arith.mulf %43, %42 : vector<8x128xbf16>
    %c3 = arith.constant 3 : index
    %c0_21 = arith.constant 0 : index
    %c0_22 = arith.constant 0 : index
    %45 = vector.load %arg2[%c3, %c0_21, %c0_22] : memref<6x128x128xbf16, #tpu.memory_space<vmem>>, vector<1x128x128xbf16>
    %46 = vector.shape_cast %45 : vector<1x128x128xbf16> to vector<128x128xbf16>
    %cst_23 = arith.constant dense<0.000000e+00> : vector<8x128xf32>
    %47 = tpu.matmul %44, %46, %cst_23 {dimension_numbers = #tpu.dot_dimension_numbers<[1], [0], [0], [1], [0, 0, 1, 1], [], []>} : vector<8x128xbf16>, vector<128x128xbf16>, vector<8x128xf32> -> vector<8x128xf32>
    %48 = vector.extract_strided_slice %0 {offsets = [3, 0], sizes = [1, 128], strides = [1, 1]} : vector<8x128xf32> to vector<1x128xf32>
    %49 = vector.broadcast %48 : vector<1x128xf32> to vector<8x128xf32>
    %50 = arith.addf %47, %49 : vector<8x128xf32>
    %51 = arith.truncf %50 : vector<8x128xf32> to vector<8x128xbf16>
    %cst_24 = arith.constant 5.000000e-01 : bf16
    %52 = vector.broadcast %cst_24 : bf16 to vector<8x128xbf16>
    %53 = arith.mulf %52, %51 : vector<8x128xbf16>
    %54 = math.tanh %53 : vector<8x128xbf16>
    %cst_25 = arith.constant 1.000000e+00 : bf16
    %55 = vector.broadcast %cst_25 : bf16 to vector<8x128xbf16>
    %56 = arith.addf %54, %55 : vector<8x128xbf16>
    %cst_26 = arith.constant 5.000000e-01 : bf16
    %57 = vector.broadcast %cst_26 : bf16 to vector<8x128xbf16>
    %58 = arith.mulf %57, %56 : vector<8x128xbf16>
    %c4 = arith.constant 4 : index
    %c0_27 = arith.constant 0 : index
    %c0_28 = arith.constant 0 : index
    %59 = vector.load %arg2[%c4, %c0_27, %c0_28] : memref<6x128x128xbf16, #tpu.memory_space<vmem>>, vector<1x128x128xbf16>
    %60 = vector.shape_cast %59 : vector<1x128x128xbf16> to vector<128x128xbf16>
    %cst_29 = arith.constant dense<0.000000e+00> : vector<8x128xf32>
    %61 = tpu.matmul %58, %60, %cst_29 {dimension_numbers = #tpu.dot_dimension_numbers<[1], [0], [0], [1], [0, 0, 1, 1], [], []>} : vector<8x128xbf16>, vector<128x128xbf16>, vector<8x128xf32> -> vector<8x128xf32>
    %62 = vector.extract_strided_slice %0 {offsets = [4, 0], sizes = [1, 128], strides = [1, 1]} : vector<8x128xf32> to vector<1x128xf32>
    %63 = vector.broadcast %62 : vector<1x128xf32> to vector<8x128xf32>
    %64 = arith.addf %61, %63 : vector<8x128xf32>
    %65 = arith.truncf %64 : vector<8x128xf32> to vector<8x128xbf16>
    %cst_30 = arith.constant 5.000000e-01 : bf16
    %66 = vector.broadcast %cst_30 : bf16 to vector<8x128xbf16>
    %67 = arith.mulf %66, %65 : vector<8x128xbf16>
    %68 = math.tanh %67 : vector<8x128xbf16>
    %cst_31 = arith.constant 1.000000e+00 : bf16
    %69 = vector.broadcast %cst_31 : bf16 to vector<8x128xbf16>
    %70 = arith.addf %68, %69 : vector<8x128xbf16>
    %cst_32 = arith.constant 5.000000e-01 : bf16
    %71 = vector.broadcast %cst_32 : bf16 to vector<8x128xbf16>
    %72 = arith.mulf %71, %70 : vector<8x128xbf16>
    %c5 = arith.constant 5 : index
    %c0_33 = arith.constant 0 : index
    %c0_34 = arith.constant 0 : index
    %73 = vector.load %arg2[%c5, %c0_33, %c0_34] : memref<6x128x128xbf16, #tpu.memory_space<vmem>>, vector<1x128x128xbf16>
    %74 = vector.shape_cast %73 : vector<1x128x128xbf16> to vector<128x128xbf16>
    %cst_35 = arith.constant dense<0.000000e+00> : vector<8x128xf32>
    %75 = tpu.matmul %72, %74, %cst_35 {dimension_numbers = #tpu.dot_dimension_numbers<[1], [0], [0], [1], [0, 0, 1, 1], [], []>} : vector<8x128xbf16>, vector<128x128xbf16>, vector<8x128xf32> -> vector<8x128xf32>
    %76 = vector.extract_strided_slice %0 {offsets = [5, 0], sizes = [1, 128], strides = [1, 1]} : vector<8x128xf32> to vector<1x128xf32>
    %77 = vector.broadcast %76 : vector<1x128xf32> to vector<8x128xf32>
    %78 = arith.addf %75, %77 : vector<8x128xf32>
    %79 = tpu.iota {dimensions = array<i32: 1>} : vector<8x128xi32>
    %c10_i32 = arith.constant 10 : i32
    %80 = vector.broadcast %c10_i32 : i32 to vector<8x128xi32>
    %81 = arith.cmpi slt, %79, %80 : vector<8x128xi32>
    %cst_36 = arith.constant -1.000000e+30 : f32
    %82 = vector.broadcast %cst_36 : f32 to vector<8x128xf32>
    %83 = arith.select %81, %78, %82 : vector<8x128xi1>, vector<8x128xf32>
    %cst_37 = arith.constant dense<0xFF800000> : vector<8xf32>
    %84 = vector.multi_reduction <maximumf>, %83, %cst_37 [1] : vector<8x128xf32> to vector<8xf32>
    %85 = vector.shape_cast %84 : vector<8xf32> to vector<8x1xf32>
    %86 = vector.broadcast %85 : vector<8x1xf32> to vector<8x128xf32>
    %87 = arith.subf %83, %86 : vector<8x128xf32>
    %88 = math.exp %87 : vector<8x128xf32>
    %cst_38 = arith.constant dense<0.000000e+00> : vector<8xf32>
    %89 = vector.multi_reduction <add>, %88, %cst_38 [1] : vector<8x128xf32> to vector<8xf32>
    %90 = vector.shape_cast %89 : vector<8xf32> to vector<8x1xf32>
    %91 = math.log %90 : vector<8x1xf32>
    %92 = vector.broadcast %91 : vector<8x1xf32> to vector<8x128xf32>
    %93 = arith.subf %87, %92 : vector<8x128xf32>
    %94 = vector.extract_strided_slice %93 {offsets = [0, 0], sizes = [8, 10], strides = [1, 1]} : vector<8x128xf32> to vector<8x10xf32>
    %c0_39 = arith.constant 0 : index
    %c0_40 = arith.constant 0 : index
    %95 = vector.load %arg4[%c0_39, %c0_40] : memref<8x10xf32, #tpu.memory_space<vmem>>, vector<8x10xf32>
    tpu.vector_store %arg4[%c0_39, %c0_40], %94 {strides = array<i32>} : memref<8x10xf32, #tpu.memory_space<vmem>>, vector<8x10xf32>,
    return
  }
  func.func @transform_0(%arg0: i32) -> (i32, i32) {
    %c0_i32 = arith.constant 0 : i32
    %c0_i32_0 = arith.constant 0 : i32
    return %arg0, %c0_i32 : i32, i32
  }
  func.func @transform_1(%arg0: i32) -> (i32, i32, i32) {
    %c0_i32 = arith.constant 0 : i32
    %c0_i32_0 = arith.constant 0 : i32
    %c0_i32_1 = arith.constant 0 : i32
    %c0_i32_2 = arith.constant 0 : i32
    return %c0_i32, %c0_i32_0, %c0_i32_1 : i32, i32, i32
  }
  func.func @transform_2(%arg0: i32) -> (i32, i32) {
    %c0_i32 = arith.constant 0 : i32
    %c0_i32_0 = arith.constant 0 : i32
    %c0_i32_1 = arith.constant 0 : i32
    return %c0_i32, %c0_i32_0 : i32, i32
  }
  func.func @transform_3(%arg0: i32) -> (i32, i32) {
    %c0_i32 = arith.constant 0 : i32
    %c0_i32_0 = arith.constant 0 : i32
    return %arg0, %c0_i32 : i32, i32
  }
}

</mosaic_0001>

<llo_original>
// kernel: modelf_forward.1
$region0: #{modelf_forward.1}
  #allocation0 [shape = 'u32[]', space=smem, size = 0x4, offset = 0x4, fixed_abs, tag = 'smem constant byte address 0x4 - core index']
  #allocation1 [shape = 'u32[72,128]{1,0:T(1,128)}', space=vmem, size = 0x9000, scoped, tag = 'internal scratch']
  %s0 = inlined_call_operand.vmem [shape: f32[8,64], index: 0, kind: input, shape index: {}]
  %s1 = inlined_call_operand.hbm [shape: bf16[6,128,128], index: 1, kind: input, shape index: {}]
  %s2 = inlined_call_operand.vmem [shape: f32[8,128], index: 2, kind: input, shape index: {}]
  %s3 = inlined_call_operand.vmem [shape: f32[8,10], index: 3, kind: output, shape index: {}]
  %s4 = sld [smem:[#allocation0]]
  $region26: #{modelf_forward.1} parent=0
    _
  %s6 = ssub.s32 1, %s4
  %s7 = scalar_select 0, %s6, %s4
  $region1: #{modelf_forward.1} parent=0
    #allocation2 [shape = 'u8[196608]{0}', space=vmem, size = 0x30000, scoped, tag = 'input window, operand 1, single buffered']
    #allocation3 [shape = 's32[1]{0}', space=sflag, size = 0x4, scoped, tag = 'scoped memory for modelf_forward.1']
    %8 = vsyncpa [#allocation3], 0
    // Predicated region
    $region2: #{modelf_forward.1} parent=1 // pred_check
      _
    $region3: #{modelf_forward.1} parent=1 // pred_check_branch
      %10 = sbr.rel (0) target = $region5
    $region4: #{modelf_forward.1} parent=1 // pred_region
      _
    $region5: #{modelf_forward.1} parent=1 // pred_fallthru
      _
    // Predicated region
    $region6: #{modelf_forward.1} parent=1 // pred_check
      _
    $region7: #{modelf_forward.1} parent=1 // pred_check_branch
      %12 = sbr.rel (0) target = $region9
    $region8: #{modelf_forward.1} parent=1 // pred_region
      %14 = vsyncadd [#allocation3], 0
      %s15 = sshll.u32 %s1, 4
      %s16 = int_to_ptr.hbm [resolvable:$true] %s15
      %s17 = sshll.u32 [#allocation2], 4
      %s18 = int_to_ptr.vmem [resolvable:$true] %s17
      %23 = dma.hbm_to_vmem [thread:$0]  %s16, 6144, %s18, [#allocation3], 64, 64, 4
    $region9: #{modelf_forward.1} parent=1 // pred_fallthru
      _
    // Predicated region
    $region10: #{modelf_forward.1} parent=1 // pred_check
      _
    $region11: #{modelf_forward.1} parent=1 // pred_check_branch
      %25 = sbr.rel (0) target = $region13
    $region12: #{modelf_forward.1} parent=1 // pred_region
      _
    $region13: #{modelf_forward.1} parent=1 // pred_fallthru
      _
    // Predicated region
    $region14: #{modelf_forward.1} parent=1 // pred_check
      _
    $region15: #{modelf_forward.1} parent=1 // pred_check_branch
      %27 = sbr.rel (0) target = $region17
    $region16: #{modelf_forward.1} parent=1 // pred_region
      %29 = dma.done [#allocation3], 6144
    $region17: #{modelf_forward.1} parent=1 // pred_fallthru
      _
    %v31 = vld [vmem:[%s2] sm:$0xff]
    %v32 = vld [vmem:[%s0] sm:$0xff]
    %v33 = vpack.c.bf16 %v32, %v32
    %v34 = vld [vmem:[#allocation2] sm:$0xf]
    %v35 = vld [vmem:[#allocation2 + $0x4] sm:$0xf]
    %v36 = vld [vmem:[#allocation2 + $0x8] sm:$0xf]
    %v37 = vld [vmem:[#allocation2 + $0xc] sm:$0xf]
    %v38 = vld [vmem:[#allocation2 + $0x10] sm:$0xf]
    %v39 = vld [vmem:[#allocation2 + $0x14] sm:$0xf]
    %v40 = vld [vmem:[#allocation2 + $0x18] sm:$0xf]
    %v41 = vld [vmem:[#allocation2 + $0x1c] sm:$0xf]
    %v42 = vperm.slane %v31, 0
    %v51 = vunpack.c.l.b16 %v34
    %v52 = vunpack.c.l.b16 %v35
    %v53 = vunpack.c.l.b16 %v36
    %v54 = vunpack.c.l.b16 %v37
    %v55 = vunpack.c.l.b16 %v38
    %v56 = vunpack.c.l.b16 %v39
    %v57 = vunpack.c.l.b16 %v40
    %v58 = vunpack.c.l.b16 %v41
    %v59 = vpack.c.b16 %v52, %v51
    %v60 = vpack.c.b16 %v54, %v53
    %v61 = vpack.c.b16 %v56, %v55
    %v62 = vpack.c.b16 %v58, %v57
    %vm67 = vcmask 523264
    %v69 = vsel %vm67, %v33, 0
    %71 = vmatpush.bf16.msra.mxu0 0
    %72 = vmatpush.bf16.msra.mxu0 0
    %73 = vmatpush.bf16.msra.mxu0 0
    %74 = vmatpush.bf16.msra.mxu0 0
    %75 = vmatpush.bf16.msra.mxu0 %v62
    %76 = vmatpush.bf16.msra.mxu0 %v61
    %77 = vmatpush.bf16.msra.mxu0 %v60
    %78 = vmatpush.bf16.msra.mxu0 %v59
    %79 = vmatmul.bf16.gmra.mxu0 %v69
    %v80 = vpop.f32.mrf.mxu0
    %v81 = vadd.f32 %v42, %v80
    %v82 = vpop.f32.mrf.mxu0
    %83 = vdwg.mxu0
    %v84 = vpack.c.bf16 %v81, %v81
    %v85 = vunpack.c.l.bf16 %v84
    %v86 = vmul.f32 %v85, 0.5
    %v87 = vpack.c.bf16 %v86, %v86
    %v88 = vunpack.c.l.bf16 %v87
    %v89 = vtanh.pop %v88
    %v90 = vpack.c.bf16 %v89, %v89
    %v91 = vunpack.c.l.bf16 %v90
    %v92 = vadd.f32 %v91, 1.0
    %v93 = vpack.c.bf16 %v92, %v92
    %v94 = vunpack.c.l.bf16 %v93
    %v95 = vmul.f32 %v94, 0.5
    %v96 = vpack.c.bf16 %v95, %v95
    %s97 = scalar_lea.vmem [#allocation2], 64
    %v98 = vld [vmem:[%s97] sm:$0xf]
    %v99 = vld [vmem:[%s97 + $0x4] sm:$0xf]
    %v100 = vld [vmem:[%s97 + $0x8] sm:$0xf]
    %v101 = vld [vmem:[%s97 + $0xc] sm:$0xf]
    %v102 = vld [vmem:[%s97 + $0x10] sm:$0xf]
    %v103 = vld [vmem:[%s97 + $0x14] sm:$0xf]
    %v104 = vld [vmem:[%s97 + $0x18] sm:$0xf]
    %v105 = vld [vmem:[%s97 + $0x1c] sm:$0xf]
    %v106 = vld [vmem:[%s97 + $0x20] sm:$0xf]
    %v107 = vld [vmem:[%s97 + $0x24] sm:$0xf]
    %v108 = vld [vmem:[%s97 + $0x28] sm:$0xf]
    %v109 = vld [vmem:[%s97 + $0x2c] sm:$0xf]
    %v110 = vld [vmem:[%s97 + $0x30] sm:$0xf]
    %v111 = vld [vmem:[%s97 + $0x34] sm:$0xf]
    %v112 = vld [vmem:[%s97 + $0x38] sm:$0xf]
    %v113 = vld [vmem:[%s97 + $0x3c] sm:$0xf]
    %v114 = vperm.slane %v31, 1
    %v131 = vunpack.c.l.b16 %v98
    %v132 = vunpack.c.l.b16 %v99
    %v133 = vunpack.c.l.b16 %v100
    %v134 = vunpack.c.l.b16 %v101
    %v135 = vunpack.c.l.b16 %v102
    %v136 = vunpack.c.l.b16 %v103
    %v137 = vunpack.c.l.b16 %v104
    %v138 = vunpack.c.l.b16 %v105
    %v139 = vunpack.c.l.b16 %v106
    %v140 = vunpack.c.l.b16 %v107
    %v141 = vunpack.c.l.b16 %v108
    %v142 = vunpack.c.l.b16 %v109
    %v143 = vunpack.c.l.b16 %v110
    %v144 = vunpack.c.l.b16 %v111
    %v145 = vunpack.c.l.b16 %v112
    %v146 = vunpack.c.l.b16 %v113
    %v147 = vpack.c.b16 %v132, %v131
    %v148 = vpack.c.b16 %v134, %v133
    %v149 = vpack.c.b16 %v136, %v135
    %v150 = vpack.c.b16 %v138, %v137
    %v151 = vpack.c.b16 %v140, %v139
    %v152 = vpack.c.b16 %v142, %v141
    %v153 = vpack.c.b16 %v144, %v143
    %v154 = vpack.c.b16 %v146, %v145
    %163 = vmatpush.bf16.msra.mxu0 %v154
    %164 = vmatpush.bf16.msra.mxu0 %v153
    %165 = vmatpush.bf16.msra.mxu0 %v152
    %166 = vmatpush.bf16.msra.mxu0 %v151
    %167 = vmatpush.bf16.msra.mxu0 %v150
    %168 = vmatpush.bf16.msra.mxu0 %v149
    %169 = vmatpush.bf16.msra.mxu0 %v148
    %170 = vmatpush.bf16.msra.mxu0 %v147
    %171 = vmatmul.bf16.gmra.mxu0 %v96
    %v172 = vpop.f32.mrf.mxu0
    %v173 = vadd.f32 %v114, %v172
    %v174 = vpop.f32.mrf.mxu0
    %175 = vdwg.mxu0
    %v176 = vpack.c.bf16 %v173, %v173
    %v177 = vunpack.c.l.bf16 %v176
    %v178 = vmul.f32 %v177, 0.5
    %v179 = vpack.c.bf16 %v178, %v178
    %v180 = vunpack.c.l.bf16 %v179
    %v181 = vtanh.pop %v180
    %v182 = vpack.c.bf16 %v181, %v181
    %v183 = vunpack.c.l.bf16 %v182
    %v184 = vadd.f32 %v183, 1.0
    %v185 = vpack.c.bf16 %v184, %v184
    %v186 = vunpack.c.l.bf16 %v185
    %v187 = vmul.f32 %v186, 0.5
    %v188 = vpack.c.bf16 %v187, %v187
    %s189 = scalar_lea.vmem [#allocation2], 128
    %v190 = vld [vmem:[%s189] sm:$0xf]
    %v191 = vld [vmem:[%s189 + $0x4] sm:$0xf]
    %v192 = vld [vmem:[%s189 + $0x8] sm:$0xf]
    %v193 = vld [vmem:[%s189 + $0xc] sm:$0xf]
    %v194 = vld [vmem:[%s189 + $0x10] sm:$0xf]
    %v195 = vld [vmem:[%s189 + $0x14] sm:$0xf]
    %v196 = vld [vmem:[%s189 + $0x18] sm:$0xf]
    %v197 = vld [vmem:[%s189 + $0x1c] sm:$0xf]
    %v198 = vld [vmem:[%s189 + $0x20] sm:$0xf]
    %v199 = vld [vmem:[%s189 + $0x24] sm:$0xf]
    %v200 = vld [vmem:[%s189 + $0x28] sm:$0xf]
    %v201 = vld [vmem:[%s189 + $0x2c] sm:$0xf]
    %v202 = vld [vmem:[%s189 + $0x30] sm:$0xf]
    %v203 = vld [vmem:[%s189 + $0x34] sm:$0xf]
    %v204 = vld [vmem:[%s189 + $0x38] sm:$0xf]
    %v205 = vld [vmem:[%s189 + $0x3c] sm:$0xf]
    %v206 = vperm.slane %v31, 2
    %v223 = vunpack.c.l.b16 %v190
    %v224 = vunpack.c.l.b16 %v191
    %v225 = vunpack.c.l.b16 %v192
    %v226 = vunpack.c.l.b16 %v193
    %v227 = vunpack.c.l.b16 %v194
    %v228 = vunpack.c.l.b16 %v195
    %v229 = vunpack.c.l.b16 %v196
    %v230 = vunpack.c.l.b16 %v197
    %v231 = vunpack.c.l.b16 %v198
    %v232 = vunpack.c.l.b16 %v199
    %v233 = vunpack.c.l.b16 %v200
    %v234 = vunpack.c.l.b16 %v201
    %v235 = vunpack.c.l.b16 %v202
    %v236 = vunpack.c.l.b16 %v203
    %v237 = vunpack.c.l.b16 %v204
    %v238 = vunpack.c.l.b16 %v205
    %v239 = vpack.c.b16 %v224, %v223
    %v240 = vpack.c.b16 %v226, %v225
    %v241 = vpack.c.b16 %v228, %v227
    %v242 = vpack.c.b16 %v230, %v229
    %v243 = vpack.c.b16 %v232, %v231
    %v244 = vpack.c.b16 %v234, %v233
    %v245 = vpack.c.b16 %v236, %v235
    %v246 = vpack.c.b16 %v238, %v237
    %255 = vmatpush.bf16.msra.mxu0 %v246
    %256 = vmatpush.bf16.msra.mxu0 %v245
    %257 = vmatpush.bf16.msra.mxu0 %v244
    %258 = vmatpush.bf16.msra.mxu0 %v243
    %259 = vmatpush.bf16.msra.mxu0 %v242
    %260 = vmatpush.bf16.msra.mxu0 %v241
    %261 = vmatpush.bf16.msra.mxu0 %v240
    %262 = vmatpush.bf16.msra.mxu0 %v239
    %263 = vmatmul.bf16.gmra.mxu0 %v188
    %v264 = vpop.f32.mrf.mxu0
    %v265 = vadd.f32 %v206, %v264
    %v266 = vpop.f32.mrf.mxu0
    %267 = vdwg.mxu0
    %v268 = vpack.c.bf16 %v265, %v265
    %v269 = vunpack.c.l.bf16 %v268
    %v270 = vmul.f32 %v269, 0.5
    %v271 = vpack.c.bf16 %v270, %v270
    %v272 = vunpack.c.l.bf16 %v271
    %v273 = vtanh.pop %v272
    %v274 = vpack.c.bf16 %v273, %v273
    %v275 = vunpack.c.l.bf16 %v274
    %v276 = vadd.f32 %v275, 1.0
    %v277 = vpack.c.bf16 %v276, %v276
    %v278 = vunpack.c.l.bf16 %v277
    %v279 = vmul.f32 %v278, 0.5
    %v280 = vpack.c.bf16 %v279, %v279
    %s281 = scalar_lea.vmem [#allocation2], 192
    %v282 = vld [vmem:[%s281] sm:$0xf]
    %v283 = vld [vmem:[%s281 + $0x4] sm:$0xf]
    %v284 = vld [vmem:[%s281 + $0x8] sm:$0xf]
    %v285 = vld [vmem:[%s281 + $0xc] sm:$0xf]
    %v286 = vld [vmem:[%s281 + $0x10] sm:$0xf]
    %v287 = vld [vmem:[%s281 + $0x14] sm:$0xf]
    %v288 = vld [vmem:[%s281 + $0x18] sm:$0xf]
    %v289 = vld [vmem:[%s281 + $0x1c] sm:$0xf]
    %v290 = vld [vmem:[%s281 + $0x20] sm:$0xf]
    %v291 = vld [vmem:[%s281 + $0x24] sm:$0xf]
    %v292 = vld [vmem:[%s281 + $0x28] sm:$0xf]
    %v293 = vld [vmem:[%s281 + $0x2c] sm:$0xf]
    %v294 = vld [vmem:[%s281 + $0x30] sm:$0xf]
    %v295 = vld [vmem:[%s281 + $0x34] sm:$0xf]
    %v296 = vld [vmem:[%s281 + $0x38] sm:$0xf]
    %v297 = vld [vmem:[%s281 + $0x3c] sm:$0xf]
    %v298 = vperm.slane %v31, 3
    %v315 = vunpack.c.l.b16 %v282
    %v316 = vunpack.c.l.b16 %v283
    %v317 = vunpack.c.l.b16 %v284
    %v318 = vunpack.c.l.b16 %v285
    %v319 = vunpack.c.l.b16 %v286
    %v320 = vunpack.c.l.b16 %v287
    %v321 = vunpack.c.l.b16 %v288
    %v322 = vunpack.c.l.b16 %v289
    %v323 = vunpack.c.l.b16 %v290
    %v324 = vunpack.c.l.b16 %v291
    %v325 = vunpack.c.l.b16 %v292
    %v326 = vunpack.c.l.b16 %v293
    %v327 = vunpack.c.l.b16 %v294
    %v328 = vunpack.c.l.b16 %v295
    %v329 = vunpack.c.l.b16 %v296
    %v330 = vunpack.c.l.b16 %v297
    %v331 = vpack.c.b16 %v316, %v315
    %v332 = vpack.c.b16 %v318, %v317
    %v333 = vpack.c.b16 %v320, %v319
    %v334 = vpack.c.b16 %v322, %v321
    %v335 = vpack.c.b16 %v324, %v323
    %v336 = vpack.c.b16 %v326, %v325
    %v337 = vpack.c.b16 %v328, %v327
    %v338 = vpack.c.b16 %v330, %v329
    %347 = vmatpush.bf16.msra.mxu0 %v338
    %348 = vmatpush.bf16.msra.mxu0 %v337
    %349 = vmatpush.bf16.msra.mxu0 %v336
    %350 = vmatpush.bf16.msra.mxu0 %v335
    %351 = vmatpush.bf16.msra.mxu0 %v334
    %352 = vmatpush.bf16.msra.mxu0 %v333
    %353 = vmatpush.bf16.msra.mxu0 %v332
    %354 = vmatpush.bf16.msra.mxu0 %v331
    %355 = vmatmul.bf16.gmra.mxu0 %v280
    %v356 = vpop.f32.mrf.mxu0
    %v357 = vadd.f32 %v298, %v356
    %v358 = vpop.f32.mrf.mxu0
    %359 = vdwg.mxu0
    %v360 = vpack.c.bf16 %v357, %v357
    %v361 = vunpack.c.l.bf16 %v360
    %v362 = vmul.f32 %v361, 0.5
    %v363 = vpack.c.bf16 %v362, %v362
    %v364 = vunpack.c.l.bf16 %v363
    %v365 = vtanh.pop %v364
    %v366 = vpack.c.bf16 %v365, %v365
    %v367 = vunpack.c.l.bf16 %v366
    %v368 = vadd.f32 %v367, 1.0
    %v369 = vpack.c.bf16 %v368, %v368
    %v370 = vunpack.c.l.bf16 %v369
    %v371 = vmul.f32 %v370, 0.5
    %v372 = vpack.c.bf16 %v371, %v371
    %s373 = scalar_lea.vmem [#allocation2], 256
    %v374 = vld [vmem:[%s373] sm:$0xf]
    %v375 = vld [vmem:[%s373 + $0x4] sm:$0xf]
    %v376 = vld [vmem:[%s373 + $0x8] sm:$0xf]
    %v377 = vld [vmem:[%s373 + $0xc] sm:$0xf]
    %v378 = vld [vmem:[%s373 + $0x10] sm:$0xf]
    %v379 = vld [vmem:[%s373 + $0x14] sm:$0xf]
    %v380 = vld [vmem:[%s373 + $0x18] sm:$0xf]
    %v381 = vld [vmem:[%s373 + $0x1c] sm:$0xf]
    %v382 = vld [vmem:[%s373 + $0x20] sm:$0xf]
    %v383 = vld [vmem:[%s373 + $0x24] sm:$0xf]
    %v384 = vld [vmem:[%s373 + $0x28] sm:$0xf]
    %v385 = vld [vmem:[%s373 + $0x2c] sm:$0xf]
    %v386 = vld [vmem:[%s373 + $0x30] sm:$0xf]
    %v387 = vld [vmem:[%s373 + $0x34] sm:$0xf]
    %v388 = vld [vmem:[%s373 + $0x38] sm:$0xf]
    %v389 = vld [vmem:[%s373 + $0x3c] sm:$0xf]
    %v390 = vperm.slane %v31, 4
    %v407 = vunpack.c.l.b16 %v374
    %v408 = vunpack.c.l.b16 %v375
    %v409 = vunpack.c.l.b16 %v376
    %v410 = vunpack.c.l.b16 %v377
    %v411 = vunpack.c.l.b16 %v378
    %v412 = vunpack.c.l.b16 %v379
    %v413 = vunpack.c.l.b16 %v380
    %v414 = vunpack.c.l.b16 %v381
    %v415 = vunpack.c.l.b16 %v382
    %v416 = vunpack.c.l.b16 %v383
    %v417 = vunpack.c.l.b16 %v384
    %v418 = vunpack.c.l.b16 %v385
    %v419 = vunpack.c.l.b16 %v386
    %v420 = vunpack.c.l.b16 %v387
    %v421 = vunpack.c.l.b16 %v388
    %v422 = vunpack.c.l.b16 %v389
    %v423 = vpack.c.b16 %v408, %v407
    %v424 = vpack.c.b16 %v410, %v409
    %v425 = vpack.c.b16 %v412, %v411
    %v426 = vpack.c.b16 %v414, %v413
    %v427 = vpack.c.b16 %v416, %v415
    %v428 = vpack.c.b16 %v418, %v417
    %v429 = vpack.c.b16 %v420, %v419
    %v430 = vpack.c.b16 %v422, %v421
    %439 = vmatpush.bf16.msra.mxu0 %v430
    %440 = vmatpush.bf16.msra.mxu0 %v429
    %441 = vmatpush.bf16.msra.mxu0 %v428
    %442 = vmatpush.bf16.msra.mxu0 %v427
    %443 = vmatpush.bf16.msra.mxu0 %v426
    %444 = vmatpush.bf16.msra.mxu0 %v425
    %445 = vmatpush.bf16.msra.mxu0 %v424
    %446 = vmatpush.bf16.msra.mxu0 %v423
    %447 = vmatmul.bf16.gmra.mxu0 %v372
    %v448 = vpop.f32.mrf.mxu0
    %v449 = vadd.f32 %v390, %v448
    %v450 = vpop.f32.mrf.mxu0
    %451 = vdwg.mxu0
    %v452 = vpack.c.bf16 %v449, %v449
    %v453 = vunpack.c.l.bf16 %v452
    %v454 = vmul.f32 %v453, 0.5
    %v455 = vpack.c.bf16 %v454, %v454
    %v456 = vunpack.c.l.bf16 %v455
    %v457 = vtanh.pop %v456
    %v458 = vpack.c.bf16 %v457, %v457
    %v459 = vunpack.c.l.bf16 %v458
    %v460 = vadd.f32 %v459, 1.0
    %v461 = vpack.c.bf16 %v460, %v460
    %v462 = vunpack.c.l.bf16 %v461
    %v463 = vmul.f32 %v462, 0.5
    %v464 = vpack.c.bf16 %v463, %v463
    %s465 = scalar_lea.vmem [#allocation2], 320
    %v466 = vld [vmem:[%s465] sm:$0xf]
    %v467 = vld [vmem:[%s465 + $0x4] sm:$0xf]
    %v468 = vld [vmem:[%s465 + $0x8] sm:$0xf]
    %v469 = vld [vmem:[%s465 + $0xc] sm:$0xf]
    %v470 = vld [vmem:[%s465 + $0x10] sm:$0xf]
    %v471 = vld [vmem:[%s465 + $0x14] sm:$0xf]
    %v472 = vld [vmem:[%s465 + $0x18] sm:$0xf]
    %v473 = vld [vmem:[%s465 + $0x1c] sm:$0xf]
    %v474 = vld [vmem:[%s465 + $0x20] sm:$0xf]
    %v475 = vld [vmem:[%s465 + $0x24] sm:$0xf]
    %v476 = vld [vmem:[%s465 + $0x28] sm:$0xf]
    %v477 = vld [vmem:[%s465 + $0x2c] sm:$0xf]
    %v478 = vld [vmem:[%s465 + $0x30] sm:$0xf]
    %v479 = vld [vmem:[%s465 + $0x34] sm:$0xf]
    %v480 = vld [vmem:[%s465 + $0x38] sm:$0xf]
    %v481 = vld [vmem:[%s465 + $0x3c] sm:$0xf]
    %v482 = vperm.slane %v31, 5
    %v499 = vunpack.c.l.b16 %v466
    %v500 = vunpack.c.l.b16 %v467
    %v501 = vunpack.c.l.b16 %v468
    %v502 = vunpack.c.l.b16 %v469
    %v503 = vunpack.c.l.b16 %v470
    %v504 = vunpack.c.l.b16 %v471
    %v505 = vunpack.c.l.b16 %v472
    %v506 = vunpack.c.l.b16 %v473
    %v507 = vunpack.c.l.b16 %v474
    %v508 = vunpack.c.l.b16 %v475
    %v509 = vunpack.c.l.b16 %v476
    %v510 = vunpack.c.l.b16 %v477
    %v511 = vunpack.c.l.b16 %v478
    %v512 = vunpack.c.l.b16 %v479
    %v513 = vunpack.c.l.b16 %v480
    %v514 = vunpack.c.l.b16 %v481
    %v515 = vpack.c.b16 %v500, %v499
    %v516 = vpack.c.b16 %v502, %v501
    %v517 = vpack.c.b16 %v504, %v503
    %v518 = vpack.c.b16 %v506, %v505
    %v519 = vpack.c.b16 %v508, %v507
    %v520 = vpack.c.b16 %v510, %v509
    %v521 = vpack.c.b16 %v512, %v511
    %v522 = vpack.c.b16 %v514, %v513
    %531 = vmatpush.bf16.msra.mxu0 %v522
    %532 = vmatpush.bf16.msra.mxu0 %v521
    %533 = vmatpush.bf16.msra.mxu0 %v520
    %534 = vmatpush.bf16.msra.mxu0 %v519
    %535 = vmatpush.bf16.msra.mxu0 %v518
    %536 = vmatpush.bf16.msra.mxu0 %v517
    %537 = vmatpush.bf16.msra.mxu0 %v516
    %538 = vmatpush.bf16.msra.mxu0 %v515
    %539 = vmatmul.bf16.gmra.mxu0 %v464
    %v540 = vpop.f32.mrf.mxu0
    %v541 = vadd.f32 %v482, %v540
    %v542 = vpop.f32.mrf.mxu0
    %543 = vdwg.mxu0
    %v544 = vlaneseq
    %v545 = vand.u32 %v544, 127
    %vm546 = vcmp.lt.s32.totalorder %v545, 10
    %v547 = vsel %vm546, %v541, -1e+30
    %548 = vmax.xlane.f32.xlu0 %v547
    %v549 = vpop.xlane.xlu0 %548
    %v550 = vsub.f32 %v547, %v549
    %v551 = vmul.f32 %v550, 1.442695
    %v552 = vpow.pop %v551
    %553 = vadd.xlane.f32.xlu0 %v552
    %v554 = vpop.xlane.xlu0 %553
    %v555 = vlog2.pop %v554
    %v556 = vmul.f32 %v555, 0.6931472
    %v557 = vsub.f32 %v550, %v556
    %vm558 = vcmask 80896
    %559 = vst.msk [vmem:[%s3] sm:$0xff] %vm558, %v557
    // Predicated region
    $region18: #{modelf_forward.1} parent=1 // pred_check
      _
    $region19: #{modelf_forward.1} parent=1 // pred_check_branch
      %561 = sbr.rel (0) target = $region21
    $region20: #{modelf_forward.1} parent=1 // pred_region
      _
    $region21: #{modelf_forward.1} parent=1 // pred_fallthru
      _
    // Predicated region
    $region22: #{modelf_forward.1} parent=1 // pred_check
      _
    $region23: #{modelf_forward.1} parent=1 // pred_check_branch
      %563 = sbr.rel (0) target = $region25
    $region24: #{modelf_forward.1} parent=1 // pred_region
      _
    $region25: #{modelf_forward.1} parent=1 // pred_fallthru
      _
    %564 = vsyncpa [#allocation3], 1

</llo_original>
